<compile_context>
chip_gen: v7x
topology: tpu7x:2x2x1
jax: 0.10.0
libtpu: 0.0.40
codegen_flags: <defaults>
</compile_context>

<pallas_src>
import jax
import jax.numpy as jnp
from jax.experimental import pallas as pl
from jax.experimental.pallas import tpu as pltpu

BN_EPS = 1e-5
CLAMP_LO = 1.0 / 20.0
CLAMP_HI = 20.0


def temperature_net_kernel(st_ref, w_ref, bias_ref, out_ref):
    B, P = out_ref.shape

    # Hoist the three (B, P) bias broadcasts off the inter-matmul critical path.
    b1 = jnp.broadcast_to(bias_ref[0:1, :], (B, P))
    b2 = jnp.broadcast_to(bias_ref[1:2, :], (B, P))
    b3 = jnp.broadcast_to(bias_ref[2:3, :], (B, P))

    # |mean(src,1) - mean(tgt,1)| == |sum(src - tgt, 1)| / M ;  the 1/M factor
    # is folded into W1 on the host, so only one XLU reduction is needed here.
    x = jnp.abs(jnp.sum(st_ref[0] - st_ref[1], axis=1))             # (B, P) f32

    # Layer 1: Linear (+ folded BN + folded 1/M) + ReLU.  bf16 MXU, f32 acc.
    h = jnp.dot(x.astype(w_ref.dtype), w_ref[0],
                preferred_element_type=jnp.float32) + b1
    h = jnp.maximum(h, 0.0)

    # Layer 2: Linear (+ folded BN) + ReLU.
    h = jnp.dot(h.astype(w_ref.dtype), w_ref[1],
                preferred_element_type=jnp.float32) + b2
    h = jnp.maximum(h, 0.0)

    # Layer 3: Linear + ReLU.
    h = jnp.dot(h.astype(w_ref.dtype), w_ref[2],
                preferred_element_type=jnp.float32) + b3
    h = jnp.maximum(h, 0.0)

    # torch.clamp(residual, 1/20, 20)  (clamp-of-ReLU == ReLU-then-clamp here)
    out_ref[...] = jnp.clip(h, CLAMP_LO, CLAMP_HI)


def fold_params(params, M):
    """Host-side folding: eval-mode BN into W/b, 1/M (mean) into W1, pack operands.

    Returns (w_pack, bias_pack):
      w_pack    (3, P, P) bf16  -- one DMA for all three weight matrices
      bias_pack (3, P)    f32   -- one DMA for all three (BN-folded) biases
    """
    (w1, b1, g1, be1, m1, v1,
     w2, b2, g2, be2, m2, v2,
     w3, b3) = params
    s1 = g1 * jax.lax.rsqrt(v1 + BN_EPS)          # (1, P) per-output-channel scale
    s2 = g2 * jax.lax.rsqrt(v2 + BN_EPS)
    # y = s*(xW + b - m) + be  ==  x (W*s) + ((b - m)*s + be)
    w1f = (w1 * s1) * (1.0 / float(M))            # weights are (in, out): s scales cols
    b1f = (b1 - m1) * s1 + be1
    w2f = w2 * s2
    b2f = (b2 - m2) * s2 + be2
    w_pack = jnp.stack([w1f, w2f, w3], axis=0).astype(jnp.bfloat16)          # (3, P, P)
    bias_pack = jnp.concatenate([b1f, b2f, b3], axis=0).astype(jnp.float32)  # (3, P)
    return w_pack, bias_pack


def temperature_net_high(src, tgt, folded):
    """src, tgt: (B, M, P) float32.  folded = fold_params(...).  Returns (B, P) f32."""
    B, M, P = src.shape
    w_pack, bias_pack = folded

    # Pack the two activation tensors into one operand -> one prologue DMA.
    st = jnp.stack([src, tgt], axis=0)                                        # (2, B, M, P)

    # Advisory cost hint so XLA schedules this tiny latency-bound call sanely.
    cost = pl.CostEstimate(
        flops=2 * B * P * P * 3 + 2 * B * M * P,
        transcendentals=0,
        bytes_accessed=(st.size * 4 + w_pack.size * 2
                        + bias_pack.size * 4 + B * P * 4),
    )

    vmem = pl.BlockSpec(memory_space=pltpu.MemorySpace.VMEM)
    # Gridless call: every operand is a whole-array VMEM resident (<250 KiB
    # total) -> no pipeline machinery, no double-buffer VMEM, minimal prologue.
    return pl.pallas_call(
        temperature_net_kernel,
        out_shape=jax.ShapeDtypeStruct((B, P), jnp.float32),
        in_specs=[vmem, vmem, vmem],
        out_specs=vmem,
        cost_estimate=cost,
    )(st, w_pack, bias_pack)


def init_params(key, P):
    """Parameter init mirroring the PyTorch module shapes.

    Linear weights follow PyTorch's default U(-1/sqrt(fan_in), 1/sqrt(fan_in))
    and are stored pre-transposed as (P_in, P_out).  BatchNorm gamma/beta and
    running stats get deterministic non-trivial values (eval-mode BN).
    """
    ks = jax.random.split(key, 16)
    bound = 1.0 / jnp.sqrt(float(P))

    def linear(kw, kb):
        w = jax.random.uniform(kw, (P, P), jnp.float32, -bound, bound)   # (out, in)
        b = jax.random.uniform(kb, (1, P), jnp.float32, -bound, bound)
        return w.T, b                                                    # (in, out)

    w1, b1 = linear(ks[0], ks[1])
    w2, b2 = linear(ks[2], ks[3])
    w3, b3 = linear(ks[4], ks[5])

    def bn(kg, kb, km, kv):
        g = 1.0 + 0.1 * jax.random.normal(kg, (1, P), jnp.float32)
        be = 0.1 * jax.random.normal(kb, (1, P), jnp.float32)
        m = 0.1 * jax.random.normal(km, (1, P), jnp.float32)
        v = 1.0 + 0.1 * jax.random.uniform(kv, (1, P), jnp.float32)
        return g, be, m, v

    g1, be1, m1, v1 = bn(ks[6], ks[7], ks[8], ks[9])
    g2, be2, m2, v2 = bn(ks[10], ks[11], ks[12], ks[13])

    return (w1, b1, g1, be1, m1, v1,
            w2, b2, g2, be2, m2, v2,
            w3, b3)


def reference_forward(src, tgt, params):
    """Pure-JAX f32 reference of the PyTorch forward (eval-mode BN, unfolded)."""
    (w1, b1, g1, be1, m1, v1,
     w2, b2, g2, be2, m2, v2,
     w3, b3) = params
    x = jnp.abs(src.mean(axis=1) - tgt.mean(axis=1))
    h = x @ w1 + b1
    h = g1 * (h - m1) / jnp.sqrt(v1 + BN_EPS) + be1
    h = jnp.maximum(h, 0.0)
    h = h @ w2 + b2
    h = g2 * (h - m2) / jnp.sqrt(v2 + BN_EPS) + be2
    h = jnp.maximum(h, 0.0)
    h = h @ w3 + b3
    h = jnp.maximum(h, 0.0)
    return jnp.clip(h, CLAMP_LO, CLAMP_HI)


if __name__ == "__main__":
    B, M, P = 8, 8, 128   # batch, points (reduced dim), num_preserved_point

    key = jax.random.PRNGKey(0)
    k_src, k_tgt, k_params = jax.random.split(key, 3)
    src = jax.random.normal(k_src, (B, M, P), jnp.float32)
    tgt = jax.random.normal(k_tgt, (B, M, P), jnp.float32)
    params = init_params(k_params, P)
    folded = fold_params(params, M)

    fwd = jax.jit(lambda s, t, wp, bp: temperature_net_high(s, t, (wp, bp)))
    out = fwd(src, tgt, *folded)
    out = jax.block_until_ready(out)

    ref = reference_forward(src, tgt, params)
    assert out.shape == (B, P)
    # bf16 weights / MXU inputs => relax tolerance vs the f32 reference.
    assert jnp.allclose(out, ref, atol=2e-2, rtol=2e-2), "mismatch vs reference"

    print("KERNEL_OK")
</pallas_src>

<mosaic_0001>
module attributes {stable_mosaic.version = 11 : i64} {
  func.func @temperature_net_kernel(%arg0: memref<2x8x8x128xf32, #tpu.memory_space<vmem>>, %arg1: memref<3x128x128xbf16, #tpu.memory_space<vmem>>, %arg2: memref<3x128xf32, #tpu.memory_space<vmem>>, %arg3: memref<8x128xf32, #tpu.memory_space<vmem>>) attributes {dimension_semantics = [], scalar_prefetch = 0 : i64, scratch_operands = 0 : i64, tpu.core_type = #tpu.core_type<tc>} {
    %c0 = arith.constant 0 : index
    %c0_0 = arith.constant 0 : index
    %0 = vector.load %arg2[%c0, %c0_0] : memref<3x128xf32, #tpu.memory_space<vmem>>, vector<1x128xf32>
    %1 = vector.shape_cast %0 : vector<1x128xf32> to vector<1x128xf32>
    %2 = vector.broadcast %1 : vector<1x128xf32> to vector<8x128xf32>
    %c1 = arith.constant 1 : index
    %c0_1 = arith.constant 0 : index
    %3 = vector.load %arg2[%c1, %c0_1] : memref<3x128xf32, #tpu.memory_space<vmem>>, vector<1x128xf32>
    %4 = vector.shape_cast %3 : vector<1x128xf32> to vector<1x128xf32>
    %5 = vector.broadcast %4 : vector<1x128xf32> to vector<8x128xf32>
    %c2 = arith.constant 2 : index
    %c0_2 = arith.constant 0 : index
    %6 = vector.load %arg2[%c2, %c0_2] : memref<3x128xf32, #tpu.memory_space<vmem>>, vector<1x128xf32>
    %7 = vector.shape_cast %6 : vector<1x128xf32> to vector<1x128xf32>
    %8 = vector.broadcast %7 : vector<1x128xf32> to vector<8x128xf32>
    %c0_3 = arith.constant 0 : index
    %c0_4 = arith.constant 0 : index
    %c0_5 = arith.constant 0 : index
    %c0_6 = arith.constant 0 : index
    %9 = vector.load %arg0[%c0_3, %c0_4, %c0_5, %c0_6] : memref<2x8x8x128xf32, #tpu.memory_space<vmem>>, vector<1x8x8x128xf32>
    %10 = vector.shape_cast %9 : vector<1x8x8x128xf32> to vector<8x8x128xf32>
    %c1_7 = arith.constant 1 : index
    %c0_8 = arith.constant 0 : index
    %c0_9 = arith.constant 0 : index
    %c0_10 = arith.constant 0 : index
    %11 = vector.load %arg0[%c1_7, %c0_8, %c0_9, %c0_10] : memref<2x8x8x128xf32, #tpu.memory_space<vmem>>, vector<1x8x8x128xf32>
    %12 = vector.shape_cast %11 : vector<1x8x8x128xf32> to vector<8x8x128xf32>
    %13 = arith.subf %10, %12 : vector<8x8x128xf32>
    %cst = arith.constant dense<0.000000e+00> : vector<8x128xf32>
    %14 = vector.multi_reduction <add>, %13, %cst [1] : vector<8x8x128xf32> to vector<8x128xf32>
    %15 = math.absf %14 : vector<8x128xf32>
    %16 = arith.truncf %15 : vector<8x128xf32> to vector<8x128xbf16>
    %c0_11 = arith.constant 0 : index
    %c0_12 = arith.constant 0 : index
    %c0_13 = arith.constant 0 : index
    %17 = vector.load %arg1[%c0_11, %c0_12, %c0_13] : memref<3x128x128xbf16, #tpu.memory_space<vmem>>, vector<1x128x128xbf16>
    %18 = vector.shape_cast %17 : vector<1x128x128xbf16> to vector<128x128xbf16>
    %cst_14 = arith.constant dense<0.000000e+00> : vector<8x128xf32>
    %19 = tpu.matmul %16, %18, %cst_14 {dimension_numbers = #tpu.dot_dimension_numbers<[1], [0], [0], [1], [0, 0, 1, 1], [], []>} : vector<8x128xbf16>, vector<128x128xbf16>, vector<8x128xf32> -> vector<8x128xf32>
    %20 = arith.addf %19, %2 : vector<8x128xf32>
    %cst_15 = arith.constant 0.000000e+00 : f32
    %21 = vector.broadcast %cst_15 : f32 to vector<8x128xf32>
    %22 = arith.maximumf %20, %21 : vector<8x128xf32>
    %23 = arith.truncf %22 : vector<8x128xf32> to vector<8x128xbf16>
    %c1_16 = arith.constant 1 : index
    %c0_17 = arith.constant 0 : index
    %c0_18 = arith.constant 0 : index
    %24 = vector.load %arg1[%c1_16, %c0_17, %c0_18] : memref<3x128x128xbf16, #tpu.memory_space<vmem>>, vector<1x128x128xbf16>
    %25 = vector.shape_cast %24 : vector<1x128x128xbf16> to vector<128x128xbf16>
    %cst_19 = arith.constant dense<0.000000e+00> : vector<8x128xf32>
    %26 = tpu.matmul %23, %25, %cst_19 {dimension_numbers = #tpu.dot_dimension_numbers<[1], [0], [0], [1], [0, 0, 1, 1], [], []>} : vector<8x128xbf16>, vector<128x128xbf16>, vector<8x128xf32> -> vector<8x128xf32>
    %27 = arith.addf %26, %5 : vector<8x128xf32>
    %cst_20 = arith.constant 0.000000e+00 : f32
    %28 = vector.broadcast %cst_20 : f32 to vector<8x128xf32>
    %29 = arith.maximumf %27, %28 : vector<8x128xf32>
    %30 = arith.truncf %29 : vector<8x128xf32> to vector<8x128xbf16>
    %c2_21 = arith.constant 2 : index
    %c0_22 = arith.constant 0 : index
    %c0_23 = arith.constant 0 : index
    %31 = vector.load %arg1[%c2_21, %c0_22, %c0_23] : memref<3x128x128xbf16, #tpu.memory_space<vmem>>, vector<1x128x128xbf16>
    %32 = vector.shape_cast %31 : vector<1x128x128xbf16> to vector<128x128xbf16>
    %cst_24 = arith.constant dense<0.000000e+00> : vector<8x128xf32>
    %33 = tpu.matmul %30, %32, %cst_24 {dimension_numbers = #tpu.dot_dimension_numbers<[1], [0], [0], [1], [0, 0, 1, 1], [], []>} : vector<8x128xbf16>, vector<128x128xbf16>, vector<8x128xf32> -> vector<8x128xf32>
    %34 = arith.addf %33, %8 : vector<8x128xf32>
    %cst_25 = arith.constant 0.000000e+00 : f32
    %35 = vector.broadcast %cst_25 : f32 to vector<8x128xf32>
    %36 = arith.maximumf %34, %35 : vector<8x128xf32>
    %cst_26 = arith.constant 5.000000e-02 : f32
    %cst_27 = arith.constant 2.000000e+01 : f32
    %37 = vector.broadcast %cst_26 : f32 to vector<8x128xf32>
    %38 = arith.maximumf %37, %36 : vector<8x128xf32>
    %39 = vector.broadcast %cst_27 : f32 to vector<8x128xf32>
    %40 = arith.minimumf %39, %38 : vector<8x128xf32>
    %c0_28 = arith.constant 0 : index
    %c0_29 = arith.constant 0 : index
    %41 = vector.load %arg3[%c0_28, %c0_29] : memref<8x128xf32, #tpu.memory_space<vmem>>, vector<8x128xf32>
    tpu.vector_store %arg3[%c0_28, %c0_29], %40 {strides = array<i32>} : memref<8x128xf32, #tpu.memory_space<vmem>>, vector<8x128xf32>,
    return
  }
}

</mosaic_0001>

<llo_original>
// kernel: _lambda_.1
$region0: #{_lambda_.1}
  #allocation0 [shape = 'u32[]', space=smem, size = 0x4, offset = 0x4, fixed_abs, tag = 'smem constant byte address 0x4 - core index']
  #allocation1 [shape = 'u32[144,128]{1,0:T(1,128)}', space=vmem, size = 0x12000, scoped, tag = 'internal scratch']
  %s0 = inlined_call_operand.vmem [shape: f32[2,8,8,128], index: 0, kind: input, shape index: {}]
  %s1 = inlined_call_operand.vmem [shape: bf16[3,128,128], index: 1, kind: input, shape index: {}]
  %s2 = inlined_call_operand.vmem [shape: f32[3,128], index: 2, kind: input, shape index: {}]
  %s3 = inlined_call_operand.hbm [shape: f32[8,128], index: 3, kind: output, shape index: {}]
  %s4 = sld [smem:[#allocation0]]
  $region22: #{_lambda_.1} parent=0
    _
  %s6 = ssub.s32 1, %s4
  %s7 = scalar_select 0, %s6, %s4
  $region1: #{_lambda_.1} parent=0
    #allocation2 [shape = 'u8[4096]{0}', space=vmem, size = 0x1000, scoped, tag = 'output window, operand 0, single buffered']
    #allocation3 [shape = 's32[1]{0}', space=sflag, size = 0x4, scoped, tag = 'scoped memory for _lambda_.1']
    %8 = vsyncpa [#allocation3], 0
    // Predicated region
    $region2: #{_lambda_.1} parent=1 // pred_check
      _
    $region3: #{_lambda_.1} parent=1 // pred_check_branch
      %10 = sbr.rel (0) target = $region5
    $region4: #{_lambda_.1} parent=1 // pred_region
      _
    $region5: #{_lambda_.1} parent=1 // pred_fallthru
      _
    // Predicated region
    $region6: #{_lambda_.1} parent=1 // pred_check
      _
    $region7: #{_lambda_.1} parent=1 // pred_check_branch
      %12 = sbr.rel (0) target = $region9
    $region8: #{_lambda_.1} parent=1 // pred_region
      _
    $region9: #{_lambda_.1} parent=1 // pred_fallthru
      _
    // Predicated region
    $region10: #{_lambda_.1} parent=1 // pred_check
      _
    $region11: #{_lambda_.1} parent=1 // pred_check_branch
      %14 = sbr.rel (0) target = $region13
    $region12: #{_lambda_.1} parent=1 // pred_region
      _
    $region13: #{_lambda_.1} parent=1 // pred_fallthru
      _
    %v16 = vld [vmem:[%s2] sm:$0x1]
    %v17 = vlaneseq
    %v18 = vshrl.u32 %v17, 7
    %v19 = vsub.s32 0, %v18
    %v20 = vrot.slane %v16, %v19
    %v21 = vld [vmem:[%s2 + $0x1] sm:$0x1]
    %v22 = vlaneseq
    %v23 = vshrl.u32 %v22, 7
    %v24 = vsub.s32 0, %v23
    %v25 = vrot.slane %v21, %v24
    %v26 = vld [vmem:[%s2 + $0x2] sm:$0x1]
    %v27 = vlaneseq
    %v28 = vshrl.u32 %v27, 7
    %v29 = vsub.s32 0, %v28
    %v30 = vrot.slane %v26, %v29
    %v31 = vld [vmem:[%s0] sm:$0xff]
    %v32 = vld [vmem:[%s0 + $0x8] sm:$0xff]
    %v33 = vld [vmem:[%s0 + $0x10] sm:$0xff]
    %v34 = vld [vmem:[%s0 + $0x18] sm:$0xff]
    %v35 = vld [vmem:[%s0 + $0x20] sm:$0xff]
    %v36 = vld [vmem:[%s0 + $0x28] sm:$0xff]
    %v37 = vld [vmem:[%s0 + $0x30] sm:$0xff]
    %v38 = vld [vmem:[%s0 + $0x38] sm:$0xff]
    %s39 = scalar_lea.vmem %s0, 64
    %v40 = vld [vmem:[%s39] sm:$0xff]
    %v41 = vld [vmem:[%s39 + $0x8] sm:$0xff]
    %v42 = vld [vmem:[%s39 + $0x10] sm:$0xff]
    %v43 = vld [vmem:[%s39 + $0x18] sm:$0xff]
    %v44 = vld [vmem:[%s39 + $0x20] sm:$0xff]
    %v45 = vld [vmem:[%s39 + $0x28] sm:$0xff]
    %v46 = vld [vmem:[%s39 + $0x30] sm:$0xff]
    %v47 = vld [vmem:[%s39 + $0x38] sm:$0xff]
    %v48 = vsub.f32 %v31, %v40
    %v49 = vsub.f32 %v32, %v41
    %v50 = vsub.f32 %v33, %v42
    %v51 = vsub.f32 %v34, %v43
    %v52 = vsub.f32 %v35, %v44
    %v53 = vsub.f32 %v36, %v45
    %v54 = vsub.f32 %v37, %v46
    %v55 = vsub.f32 %v38, %v47
    %v56 = vrot.slane %v48, 4
    %v57 = vadd.f32 %v48, %v56
    %v58 = vrot.slane %v57, 2
    %v59 = vadd.f32 %v57, %v58
    %v60 = vrot.slane %v59, 1
    %v61 = vadd.f32 %v59, %v60
    %v62 = vrot.slane %v49, 4
    %v63 = vadd.f32 %v49, %v62
    %v64 = vrot.slane %v63, 2
    %v65 = vadd.f32 %v63, %v64
    %v66 = vrot.slane %v65, 1
    %v67 = vadd.f32 %v65, %v66
    %v68 = vrot.slane %v50, 4
    %v69 = vadd.f32 %v50, %v68
    %v70 = vrot.slane %v69, 2
    %v71 = vadd.f32 %v69, %v70
    %v72 = vrot.slane %v71, 1
    %v73 = vadd.f32 %v71, %v72
    %v74 = vrot.slane %v51, 4
    %v75 = vadd.f32 %v51, %v74
    %v76 = vrot.slane %v75, 2
    %v77 = vadd.f32 %v75, %v76
    %v78 = vrot.slane %v77, 1
    %v79 = vadd.f32 %v77, %v78
    %v80 = vrot.slane %v52, 4
    %v81 = vadd.f32 %v52, %v80
    %v82 = vrot.slane %v81, 2
    %v83 = vadd.f32 %v81, %v82
    %v84 = vrot.slane %v83, 1
    %v85 = vadd.f32 %v83, %v84
    %v86 = vrot.slane %v53, 4
    %v87 = vadd.f32 %v53, %v86
    %v88 = vrot.slane %v87, 2
    %v89 = vadd.f32 %v87, %v88
    %v90 = vrot.slane %v89, 1
    %v91 = vadd.f32 %v89, %v90
    %v92 = vrot.slane %v54, 4
    %v93 = vadd.f32 %v54, %v92
    %v94 = vrot.slane %v93, 2
    %v95 = vadd.f32 %v93, %v94
    %v96 = vrot.slane %v95, 1
    %v97 = vadd.f32 %v95, %v96
    %v98 = vrot.slane %v55, 4
    %v99 = vadd.f32 %v55, %v98
    %v100 = vrot.slane %v99, 2
    %v101 = vadd.f32 %v99, %v100
    %v102 = vrot.slane %v101, 1
    %v103 = vadd.f32 %v101, %v102
    %v104 = vand.u32 2147483647, %v61
    %v105 = vand.u32 2147483647, %v67
    %v106 = vand.u32 2147483647, %v73
    %v107 = vand.u32 2147483647, %v79
    %v108 = vand.u32 2147483647, %v85
    %v109 = vand.u32 2147483647, %v91
    %v110 = vand.u32 2147483647, %v97
    %v111 = vand.u32 2147483647, %v103
    %v112 = vpack.c.bf16 %v104, %v104
    %v113 = vpack.c.bf16 %v105, %v105
    %v114 = vpack.c.bf16 %v106, %v106
    %v115 = vpack.c.bf16 %v107, %v107
    %v116 = vpack.c.bf16 %v108, %v108
    %v117 = vpack.c.bf16 %v109, %v109
    %v118 = vpack.c.bf16 %v110, %v110
    %v119 = vpack.c.bf16 %v111, %v111
    %v120 = vld [vmem:[%s1] sm:$0xf]
    %v121 = vld [vmem:[%s1 + $0x4] sm:$0xf]
    %v122 = vld [vmem:[%s1 + $0x8] sm:$0xf]
    %v123 = vld [vmem:[%s1 + $0xc] sm:$0xf]
    %v124 = vld [vmem:[%s1 + $0x10] sm:$0xf]
    %v125 = vld [vmem:[%s1 + $0x14] sm:$0xf]
    %v126 = vld [vmem:[%s1 + $0x18] sm:$0xf]
    %v127 = vld [vmem:[%s1 + $0x1c] sm:$0xf]
    %v128 = vld [vmem:[%s1 + $0x20] sm:$0xf]
    %v129 = vld [vmem:[%s1 + $0x24] sm:$0xf]
    %v130 = vld [vmem:[%s1 + $0x28] sm:$0xf]
    %v131 = vld [vmem:[%s1 + $0x2c] sm:$0xf]
    %v132 = vld [vmem:[%s1 + $0x30] sm:$0xf]
    %v133 = vld [vmem:[%s1 + $0x34] sm:$0xf]
    %v134 = vld [vmem:[%s1 + $0x38] sm:$0xf]
    %v135 = vld [vmem:[%s1 + $0x3c] sm:$0xf]
    %v144 = vunpack.c.l.b16 %v112
    %v145 = vunpack.c.l.b16 %v113
    %v146 = vunpack.c.l.b16 %v114
    %v147 = vunpack.c.l.b16 %v115
    %v148 = vunpack.c.l.b16 %v116
    %v149 = vunpack.c.l.b16 %v117
    %v150 = vunpack.c.l.b16 %v118
    %v151 = vunpack.c.l.b16 %v119
    %vm152 = vcmask 1041409
    %v153 = vsel %vm152, %v145, %v144
    %vm154 = vcmask 1042434
    %v155 = vsel %vm154, %v146, %v153
    %vm156 = vcmask 1043459
    %v157 = vsel %vm156, %v147, %v155
    %vm158 = vcmask 1044484
    %v159 = vsel %vm158, %v148, %v157
    %vm160 = vcmask 1045509
    %v161 = vsel %vm160, %v149, %v159
    %vm162 = vcmask 1046534
    %v163 = vsel %vm162, %v150, %v161
    %vm164 = vcmask 1047559
    %v165 = vsel %vm164, %v151, %v163
    %v166 = vpack.c.b16 %v165, %v165
    %v184 = vunpack.c.l.b16 %v120
    %v185 = vunpack.c.l.b16 %v121
    %v186 = vunpack.c.l.b16 %v122
    %v187 = vunpack.c.l.b16 %v123
    %v188 = vunpack.c.l.b16 %v124
    %v189 = vunpack.c.l.b16 %v125
    %v190 = vunpack.c.l.b16 %v126
    %v191 = vunpack.c.l.b16 %v127
    %v192 = vunpack.c.l.b16 %v128
    %v193 = vunpack.c.l.b16 %v129
    %v194 = vunpack.c.l.b16 %v130
    %v195 = vunpack.c.l.b16 %v131
    %v196 = vunpack.c.l.b16 %v132
    %v197 = vunpack.c.l.b16 %v133
    %v198 = vunpack.c.l.b16 %v134
    %v199 = vunpack.c.l.b16 %v135
    %v200 = vpack.c.b16 %v185, %v184
    %v201 = vpack.c.b16 %v187, %v186
    %v202 = vpack.c.b16 %v189, %v188
    %v203 = vpack.c.b16 %v191, %v190
    %v204 = vpack.c.b16 %v193, %v192
    %v205 = vpack.c.b16 %v195, %v194
    %v206 = vpack.c.b16 %v197, %v196
    %v207 = vpack.c.b16 %v199, %v198
    %216 = vmatprep.subr.bf16.mxu0 0
    %217 = vmatpush1.bf16.msra.mxu0 %v200
    %218 = vmatprep.subr.bf16.mxu0 0
    %219 = vmatpush1.bf16.msra.mxu0 %v201
    %220 = vmatprep.subr.bf16.mxu0 0
    %221 = vmatpush1.bf16.msra.mxu0 %v202
    %222 = vmatprep.subr.bf16.mxu0 0
    %223 = vmatpush1.bf16.msra.mxu0 %v203
    %224 = vmatprep.subr.bf16.mxu0 0
    %225 = vmatpush1.bf16.msra.mxu0 %v204
    %226 = vmatprep.subr.bf16.mxu0 0
    %227 = vmatpush1.bf16.msra.mxu0 %v205
    %228 = vmatprep.subr.bf16.mxu0 0
    %229 = vmatpush1.bf16.msra.mxu0 %v206
    %230 = vmatprep.subr.bf16.mxu0 0
    %231 = vmatpush1.bf16.msra.mxu0 %v207
    %232 = vmatprep.subr.bf16.mxu0 0
    %233 = vmatpush1.bf16.msra.mxu0 0
    %234 = vmatprep.subr.bf16.mxu0 0
    %235 = vmatpush1.bf16.msra.mxu0 0
    %236 = vmatprep.subr.bf16.mxu0 0
    %237 = vmatpush1.bf16.msra.mxu0 0
    %238 = vmatprep.subr.bf16.mxu0 0
    %239 = vmatpush1.bf16.msra.mxu0 0
    %240 = vmatprep.subr.bf16.mxu0 0
    %241 = vmatpush1.bf16.msra.mxu0 0
    %242 = vmatprep.subr.bf16.mxu0 0
    %243 = vmatpush1.bf16.msra.mxu0 0
    %244 = vmatprep.subr.bf16.mxu0 0
    %245 = vmatpush1.bf16.msra.mxu0 0
    %246 = vmatprep.subr.bf16.mxu0 0
    %247 = vmatpush1.bf16.msra.mxu0 0
    %248 = vmatprep.mubr.bf16.mxu0 0
    %249 = vmatmul.mubr.bf16.gmra.mrb[0].mxu0 %v166
    %v250 = vpop.f32.mrb[0].mxu0
    %v251 = vadd.f32 %v20, %v250
    %v252 = vpop.f32.mrb[0].mxu0
    %v253 = vpop.f32.mrb[0].mxu0
    %v254 = vpop.f32.mrb[0].mxu0
    %255 = vdwg.mxu0
    %v256 = vmax.f32 %v251, 0.0
    %v257 = vpack.c.bf16 %v256, %v256
    %s258 = scalar_lea.vmem %s1, 64
    %v259 = vld [vmem:[%s258] sm:$0xf]
    %v260 = vld [vmem:[%s258 + $0x4] sm:$0xf]
    %v261 = vld [vmem:[%s258 + $0x8] sm:$0xf]
    %v262 = vld [vmem:[%s258 + $0xc] sm:$0xf]
    %v263 = vld [vmem:[%s258 + $0x10] sm:$0xf]
    %v264 = vld [vmem:[%s258 + $0x14] sm:$0xf]
    %v265 = vld [vmem:[%s258 + $0x18] sm:$0xf]
    %v266 = vld [vmem:[%s258 + $0x1c] sm:$0xf]
    %v267 = vld [vmem:[%s258 + $0x20] sm:$0xf]
    %v268 = vld [vmem:[%s258 + $0x24] sm:$0xf]
    %v269 = vld [vmem:[%s258 + $0x28] sm:$0xf]
    %v270 = vld [vmem:[%s258 + $0x2c] sm:$0xf]
    %v271 = vld [vmem:[%s258 + $0x30] sm:$0xf]
    %v272 = vld [vmem:[%s258 + $0x34] sm:$0xf]
    %v273 = vld [vmem:[%s258 + $0x38] sm:$0xf]
    %v274 = vld [vmem:[%s258 + $0x3c] sm:$0xf]
    %v291 = vunpack.c.l.b16 %v259
    %v292 = vunpack.c.l.b16 %v260
    %v293 = vunpack.c.l.b16 %v261
    %v294 = vunpack.c.l.b16 %v262
    %v295 = vunpack.c.l.b16 %v263
    %v296 = vunpack.c.l.b16 %v264
    %v297 = vunpack.c.l.b16 %v265
    %v298 = vunpack.c.l.b16 %v266
    %v299 = vunpack.c.l.b16 %v267
    %v300 = vunpack.c.l.b16 %v268
    %v301 = vunpack.c.l.b16 %v269
    %v302 = vunpack.c.l.b16 %v270
    %v303 = vunpack.c.l.b16 %v271
    %v304 = vunpack.c.l.b16 %v272
    %v305 = vunpack.c.l.b16 %v273
    %v306 = vunpack.c.l.b16 %v274
    %v307 = vpack.c.b16 %v292, %v291
    %v308 = vpack.c.b16 %v294, %v293
    %v309 = vpack.c.b16 %v296, %v295
    %v310 = vpack.c.b16 %v298, %v297
    %v311 = vpack.c.b16 %v300, %v299
    %v312 = vpack.c.b16 %v302, %v301
    %v313 = vpack.c.b16 %v304, %v303
    %v314 = vpack.c.b16 %v306, %v305
    %323 = vmatprep.subr.bf16.mxu0 0
    %324 = vmatpush1.bf16.msra.mxu0 %v307
    %325 = vmatprep.subr.bf16.mxu0 0
    %326 = vmatpush1.bf16.msra.mxu0 %v308
    %327 = vmatprep.subr.bf16.mxu0 0
    %328 = vmatpush1.bf16.msra.mxu0 %v309
    %329 = vmatprep.subr.bf16.mxu0 0
    %330 = vmatpush1.bf16.msra.mxu0 %v310
    %331 = vmatprep.subr.bf16.mxu0 0
    %332 = vmatpush1.bf16.msra.mxu0 %v311
    %333 = vmatprep.subr.bf16.mxu0 0
    %334 = vmatpush1.bf16.msra.mxu0 %v312
    %335 = vmatprep.subr.bf16.mxu0 0
    %336 = vmatpush1.bf16.msra.mxu0 %v313
    %337 = vmatprep.subr.bf16.mxu0 0
    %338 = vmatpush1.bf16.msra.mxu0 %v314
    %339 = vmatprep.subr.bf16.mxu0 0
    %340 = vmatpush1.bf16.msra.mxu0 0
    %341 = vmatprep.subr.bf16.mxu0 0
    %342 = vmatpush1.bf16.msra.mxu0 0
    %343 = vmatprep.subr.bf16.mxu0 0
    %344 = vmatpush1.bf16.msra.mxu0 0
    %345 = vmatprep.subr.bf16.mxu0 0
    %346 = vmatpush1.bf16.msra.mxu0 0
    %347 = vmatprep.subr.bf16.mxu0 0
    %348 = vmatpush1.bf16.msra.mxu0 0
    %349 = vmatprep.subr.bf16.mxu0 0
    %350 = vmatpush1.bf16.msra.mxu0 0
    %351 = vmatprep.subr.bf16.mxu0 0
    %352 = vmatpush1.bf16.msra.mxu0 0
    %353 = vmatprep.subr.bf16.mxu0 0
    %354 = vmatpush1.bf16.msra.mxu0 0
    %355 = vmatprep.mubr.bf16.mxu0 0
    %356 = vmatmul.mubr.bf16.gmra.mrb[0].mxu0 %v257
    %v357 = vpop.f32.mrb[0].mxu0
    %v358 = vadd.f32 %v25, %v357
    %v359 = vpop.f32.mrb[0].mxu0
    %v360 = vpop.f32.mrb[0].mxu0
    %v361 = vpop.f32.mrb[0].mxu0
    %362 = vdwg.mxu0
    %v363 = vmax.f32 %v358, 0.0
    %v364 = vpack.c.bf16 %v363, %v363
    %s365 = scalar_lea.vmem %s1, 128
    %v366 = vld [vmem:[%s365] sm:$0xf]
    %v367 = vld [vmem:[%s365 + $0x4] sm:$0xf]
    %v368 = vld [vmem:[%s365 + $0x8] sm:$0xf]
    %v369 = vld [vmem:[%s365 + $0xc] sm:$0xf]
    %v370 = vld [vmem:[%s365 + $0x10] sm:$0xf]
    %v371 = vld [vmem:[%s365 + $0x14] sm:$0xf]
    %v372 = vld [vmem:[%s365 + $0x18] sm:$0xf]
    %v373 = vld [vmem:[%s365 + $0x1c] sm:$0xf]
    %v374 = vld [vmem:[%s365 + $0x20] sm:$0xf]
    %v375 = vld [vmem:[%s365 + $0x24] sm:$0xf]
    %v376 = vld [vmem:[%s365 + $0x28] sm:$0xf]
    %v377 = vld [vmem:[%s365 + $0x2c] sm:$0xf]
    %v378 = vld [vmem:[%s365 + $0x30] sm:$0xf]
    %v379 = vld [vmem:[%s365 + $0x34] sm:$0xf]
    %v380 = vld [vmem:[%s365 + $0x38] sm:$0xf]
    %v381 = vld [vmem:[%s365 + $0x3c] sm:$0xf]
    %v398 = vunpack.c.l.b16 %v366
    %v399 = vunpack.c.l.b16 %v367
    %v400 = vunpack.c.l.b16 %v368
    %v401 = vunpack.c.l.b16 %v369
    %v402 = vunpack.c.l.b16 %v370
    %v403 = vunpack.c.l.b16 %v371
    %v404 = vunpack.c.l.b16 %v372
    %v405 = vunpack.c.l.b16 %v373
    %v406 = vunpack.c.l.b16 %v374
    %v407 = vunpack.c.l.b16 %v375
    %v408 = vunpack.c.l.b16 %v376
    %v409 = vunpack.c.l.b16 %v377
    %v410 = vunpack.c.l.b16 %v378
    %v411 = vunpack.c.l.b16 %v379
    %v412 = vunpack.c.l.b16 %v380
    %v413 = vunpack.c.l.b16 %v381
    %v414 = vpack.c.b16 %v399, %v398
    %v415 = vpack.c.b16 %v401, %v400
    %v416 = vpack.c.b16 %v403, %v402
    %v417 = vpack.c.b16 %v405, %v404
    %v418 = vpack.c.b16 %v407, %v406
    %v419 = vpack.c.b16 %v409, %v408
    %v420 = vpack.c.b16 %v411, %v410
    %v421 = vpack.c.b16 %v413, %v412
    %430 = vmatprep.subr.bf16.mxu0 0
    %431 = vmatpush1.bf16.msra.mxu0 %v414
    %432 = vmatprep.subr.bf16.mxu0 0
    %433 = vmatpush1.bf16.msra.mxu0 %v415
    %434 = vmatprep.subr.bf16.mxu0 0
    %435 = vmatpush1.bf16.msra.mxu0 %v416
    %436 = vmatprep.subr.bf16.mxu0 0
    %437 = vmatpush1.bf16.msra.mxu0 %v417
    %438 = vmatprep.subr.bf16.mxu0 0
    %439 = vmatpush1.bf16.msra.mxu0 %v418
    %440 = vmatprep.subr.bf16.mxu0 0
    %441 = vmatpush1.bf16.msra.mxu0 %v419
    %442 = vmatprep.subr.bf16.mxu0 0
    %443 = vmatpush1.bf16.msra.mxu0 %v420
    %444 = vmatprep.subr.bf16.mxu0 0
    %445 = vmatpush1.bf16.msra.mxu0 %v421
    %446 = vmatprep.subr.bf16.mxu0 0
    %447 = vmatpush1.bf16.msra.mxu0 0
    %448 = vmatprep.subr.bf16.mxu0 0
    %449 = vmatpush1.bf16.msra.mxu0 0
    %450 = vmatprep.subr.bf16.mxu0 0
    %451 = vmatpush1.bf16.msra.mxu0 0
    %452 = vmatprep.subr.bf16.mxu0 0
    %453 = vmatpush1.bf16.msra.mxu0 0
    %454 = vmatprep.subr.bf16.mxu0 0
    %455 = vmatpush1.bf16.msra.mxu0 0
    %456 = vmatprep.subr.bf16.mxu0 0
    %457 = vmatpush1.bf16.msra.mxu0 0
    %458 = vmatprep.subr.bf16.mxu0 0
    %459 = vmatpush1.bf16.msra.mxu0 0
    %460 = vmatprep.subr.bf16.mxu0 0
    %461 = vmatpush1.bf16.msra.mxu0 0
    %462 = vmatprep.mubr.bf16.mxu0 0
    %463 = vmatmul.mubr.bf16.gmra.mrb[0].mxu0 %v364
    %v464 = vpop.f32.mrb[0].mxu0
    %v465 = vadd.f32 %v30, %v464
    %v466 = vpop.f32.mrb[0].mxu0
    %v467 = vpop.f32.mrb[0].mxu0
    %v468 = vpop.f32.mrb[0].mxu0
    %469 = vdwg.mxu0
    %v470 = vmax.f32 %v465, 0.0
    %v471 = vmax.f32 %v470, 0.05
    %v472 = vmin.f32 %v471, 20.0
    %473 = vst [vmem:[#allocation2] sm:$0xff] %v472
    // Predicated region
    $region14: #{_lambda_.1} parent=1 // pred_check
      _
    $region15: #{_lambda_.1} parent=1 // pred_check_branch
      %475 = sbr.rel (0) target = $region17
    $region16: #{_lambda_.1} parent=1 // pred_region
      %s477 = ssub.s32 128, 128
      %478 = vsyncadd [#allocation3], %s477
      %s480 = sshll.u32 [#allocation2], 4
      %s481 = int_to_ptr.vmem [resolvable:$true] %s480
      %483 = dma.vmem_to_hbm [thread:$0]  %s481, 128, %s3, [#allocation3]
    $region17: #{_lambda_.1} parent=1 // pred_fallthru
      _
    // Predicated region
    $region18: #{_lambda_.1} parent=1 // pred_check
      _
    $region19: #{_lambda_.1} parent=1 // pred_check_branch
      %485 = sbr.rel (0) target = $region21
    $region20: #{_lambda_.1} parent=1 // pred_region
      %486 = dma.done [#allocation3], 128
    $region21: #{_lambda_.1} parent=1 // pred_fallthru
      _
    %487 = vsyncpa [#allocation3], 1

</llo_original>
